<compile_context>
chip_gen: v7x
topology: tpu7x:2x2x1
jax: 0.10.0
libtpu: 0.0.40
codegen_flags: <defaults>
</compile_context>

<pallas_src>
from functools import partial

import numpy as np
import jax
import jax.numpy as jnp
from jax import lax
from jax.experimental import pallas as pl
from jax.experimental.pallas import tpu as pltpu


def _fused_kernel(x_ref, a_ref, bc_ref, w1_ref, b1_ref, w3_ref, b3_ref, out_ref):
    """conv(as matmul) + tanh + fc1 + tanh + fc3, fully resident in VMEM."""
    # conv lowered to a dense matmul: (B, Cin*H*W) @ (Cin*H*W, Cout*H*W)
    h = jnp.dot(x_ref[...], a_ref[...], preferred_element_type=jnp.float32)
    h = jnp.tanh(h + bc_ref[...])                      # (B, 256), torch (c,h,w) order
    # fc1 + tanh: (B, 256) @ (256, 1024)
    h = jnp.dot(h, w1_ref[...], preferred_element_type=jnp.float32)
    h = jnp.tanh(h + b1_ref[...])
    # fc3, zero-padded to a lane-dense 128-wide output: (B, 1024) @ (1024, 128)
    o = jnp.dot(h, w3_ref[...], preferred_element_type=jnp.float32)
    out_ref[...] = o + b3_ref[...]


def prepare_params(params, *, n_R=4, T=8, lane=128):
    """One-time (model-load-time) parameter re-layout.

    The 'same' 3x3 conv is a linear map on the (Cin, H, W) = (2, 4, 8) input,
    so we materialize it as a dense (Cin*H*W, Cout*H*W) = (64, 256) matrix by
    pushing the identity basis through lax.conv.  This is only sensible because
    the spatial grid is tiny; the resulting matmul is fully lane-aligned.
    """
    conv_w, conv_b, w1, b1, w3, b3 = params            # torch-shaped parameters
    Cout, Cin, _, _ = conv_w.shape
    H, W = n_R, T
    HW = H * W

    # Dense linearization of the conv; output columns come out in torch's
    # channel-major (c, h, w) flatten order, so fc1 needs no permutation.
    eye = jnp.eye(Cin * HW, dtype=jnp.float32).reshape(Cin * HW, Cin, H, W)
    A = lax.conv_general_dilated(
        eye, conv_w.astype(jnp.float32), window_strides=(1, 1), padding="SAME",
        dimension_numbers=("NCHW", "OIHW", "NCHW")).reshape(Cin * HW, Cout * HW)

    bc = jnp.repeat(conv_b.astype(jnp.float32), HW)[None, :]      # (1, Cout*HW)
    w1p = w1.astype(jnp.float32).T                                # (Cout*HW, 1024)
    b1p = b1.astype(jnp.float32)[None, :]                         # (1, 1024)

    # Pad the 66-wide head to a multiple of 128 lanes so the final store is
    # unmasked; the wrapper slices the padding off.
    out_dim = w3.shape[0]
    n_pad = pl.cdiv(out_dim, lane) * lane
    w3p = jnp.zeros((w3.shape[1], n_pad), jnp.float32).at[:, :out_dim].set(w3.astype(jnp.float32).T)
    b3p = jnp.zeros((1, n_pad), jnp.float32).at[0, :out_dim].set(b3.astype(jnp.float32))
    return (A, bc, w1p, b1p, w3p, b3p)


@partial(jax.jit, static_argnames=("out_dim",))
def cnn2ch_forward(x, prep, *, out_dim):
    A, bc, w1p, b1p, w3p, b3p = prep
    B = x.shape[0]
    # Row-major flatten of (B, Cin, H, W) -> (B, Cin*H*W): pure metadata reshape.
    x_flat = x.reshape(B, -1).astype(jnp.float32)

    vmem = pl.BlockSpec(memory_space=pltpu.MemorySpace.VMEM)
    out_padded = pl.pallas_call(
        _fused_kernel,
        out_shape=jax.ShapeDtypeStruct((B, w3p.shape[1]), jnp.float32),
        in_specs=[vmem] * 7,
        out_specs=vmem,
    )(x_flat, A, bc, w1p, b1p, w3p, b3p)
    return out_padded[:, :out_dim]                     # drop lane padding (66 of 128)


def torch_reference(x, params):
    """Pure-JAX emulation of the PyTorch forward (NCHW conv, torch flatten)."""
    conv_w, conv_b, w1, b1, w3, b3 = params
    y = lax.conv_general_dilated(
        x, conv_w, window_strides=(1, 1), padding="SAME",
        dimension_numbers=("NCHW", "OIHW", "NCHW"))
    y = jnp.tanh(y + conv_b[None, :, None, None])
    y = y.reshape(x.shape[0], -1)
    y = jnp.tanh(y @ w1.T + b1)
    return y @ w3.T + b3


def init_params(key, n_R=4, n_T=8, T=8, filt_size=3, num_channel=8):
    ks = jax.random.split(key, 6)
    fan_c = 2 * filt_size * filt_size
    fan_1 = num_channel * n_R * T
    fan_3 = 1024
    out_dim = 2 * n_R * n_T + 2
    u = lambda k, shape, s: jax.random.uniform(k, shape, jnp.float32, -s, s)
    conv_w = u(ks[0], (num_channel, 2, filt_size, filt_size), 1.0 / np.sqrt(fan_c))
    conv_b = u(ks[1], (num_channel,), 1.0 / np.sqrt(fan_c))
    w1 = u(ks[2], (1024, fan_1), 1.0 / np.sqrt(fan_1))
    b1 = u(ks[3], (1024,), 1.0 / np.sqrt(fan_1))
    w3 = u(ks[4], (out_dim, fan_3), 1.0 / np.sqrt(fan_3))
    b3 = u(ks[5], (out_dim,), 1.0 / np.sqrt(fan_3))
    return (conv_w, conv_b, w1, b1, w3, b3)


if __name__ == "__main__":
    n_R, n_T, T, filt_size, num_channel = 4, 8, 8, 3, 8
    B = 2
    out_dim = 2 * n_R * n_T + 2

    key = jax.random.PRNGKey(0)
    k_x, k_p = jax.random.split(key)
    params = init_params(k_p, n_R, n_T, T, filt_size, num_channel)
    x = jax.random.normal(k_x, (B, 2, n_R, T), jnp.float32)

    # One-time parameter re-layout, off the per-call path.
    prep = prepare_params(params, n_R=n_R, T=T)

    out = jax.block_until_ready(cnn2ch_forward(x, prep, out_dim=out_dim))
    ref = jax.block_until_ready(torch_reference(x, params))

    assert out.shape == (B, out_dim), out.shape
    np.testing.assert_allclose(np.asarray(out), np.asarray(ref), rtol=1e-4, atol=1e-4)
    print("KERNEL_OK")
</pallas_src>

<mosaic_0001>
module attributes {stable_mosaic.version = 11 : i64} {
  func.func @_fused_kernel(%arg0: memref<2x64xf32, #tpu.memory_space<vmem>>, %arg1: memref<64x256xf32, #tpu.memory_space<vmem>>, %arg2: memref<1x256xf32, #tpu.memory_space<vmem>>, %arg3: memref<256x1024xf32, #tpu.memory_space<vmem>>, %arg4: memref<1x1024xf32, #tpu.memory_space<vmem>>, %arg5: memref<1024x128xf32, #tpu.memory_space<vmem>>, %arg6: memref<1x128xf32, #tpu.memory_space<vmem>>, %arg7: memref<2x128xf32, #tpu.memory_space<vmem>>) attributes {dimension_semantics = [], scalar_prefetch = 0 : i64, scratch_operands = 0 : i64, tpu.core_type = #tpu.core_type<tc>} {
    %c0 = arith.constant 0 : index
    %c0_0 = arith.constant 0 : index
    %0 = vector.load %arg0[%c0, %c0_0] : memref<2x64xf32, #tpu.memory_space<vmem>>, vector<2x64xf32>
    %c0_1 = arith.constant 0 : index
    %c0_2 = arith.constant 0 : index
    %1 = vector.load %arg1[%c0_1, %c0_2] : memref<64x256xf32, #tpu.memory_space<vmem>>, vector<64x256xf32>
    %cst = arith.constant dense<0.000000e+00> : vector<2x256xf32>
    %2 = tpu.matmul %0, %1, %cst {dimension_numbers = #tpu.dot_dimension_numbers<[1], [0], [0], [1], [0, 0, 1, 1], [], []>} : vector<2x64xf32>, vector<64x256xf32>, vector<2x256xf32> -> vector<2x256xf32>
    %c0_3 = arith.constant 0 : index
    %c0_4 = arith.constant 0 : index
    %3 = vector.load %arg2[%c0_3, %c0_4] : memref<1x256xf32, #tpu.memory_space<vmem>>, vector<1x256xf32>
    %4 = vector.broadcast %3 : vector<1x256xf32> to vector<2x256xf32>
    %5 = arith.addf %2, %4 : vector<2x256xf32>
    %6 = math.tanh %5 : vector<2x256xf32>
    %c0_5 = arith.constant 0 : index
    %c0_6 = arith.constant 0 : index
    %7 = vector.load %arg3[%c0_5, %c0_6] : memref<256x1024xf32, #tpu.memory_space<vmem>>, vector<256x1024xf32>
    %cst_7 = arith.constant dense<0.000000e+00> : vector<2x1024xf32>
    %8 = tpu.matmul %6, %7, %cst_7 {dimension_numbers = #tpu.dot_dimension_numbers<[1], [0], [0], [1], [0, 0, 1, 1], [], []>} : vector<2x256xf32>, vector<256x1024xf32>, vector<2x1024xf32> -> vector<2x1024xf32>
    %c0_8 = arith.constant 0 : index
    %c0_9 = arith.constant 0 : index
    %9 = vector.load %arg4[%c0_8, %c0_9] : memref<1x1024xf32, #tpu.memory_space<vmem>>, vector<1x1024xf32>
    %10 = vector.broadcast %9 : vector<1x1024xf32> to vector<2x1024xf32>
    %11 = arith.addf %8, %10 : vector<2x1024xf32>
    %12 = math.tanh %11 : vector<2x1024xf32>
    %c0_10 = arith.constant 0 : index
    %c0_11 = arith.constant 0 : index
    %13 = vector.load %arg5[%c0_10, %c0_11] : memref<1024x128xf32, #tpu.memory_space<vmem>>, vector<1024x128xf32>
    %cst_12 = arith.constant dense<0.000000e+00> : vector<2x128xf32>
    %14 = tpu.matmul %12, %13, %cst_12 {dimension_numbers = #tpu.dot_dimension_numbers<[1], [0], [0], [1], [0, 0, 1, 1], [], []>} : vector<2x1024xf32>, vector<1024x128xf32>, vector<2x128xf32> -> vector<2x128xf32>
    %c0_13 = arith.constant 0 : index
    %c0_14 = arith.constant 0 : index
    %15 = vector.load %arg6[%c0_13, %c0_14] : memref<1x128xf32, #tpu.memory_space<vmem>>, vector<1x128xf32>
    %16 = vector.broadcast %15 : vector<1x128xf32> to vector<2x128xf32>
    %17 = arith.addf %14, %16 : vector<2x128xf32>
    %c0_15 = arith.constant 0 : index
    %c0_16 = arith.constant 0 : index
    %18 = vector.load %arg7[%c0_15, %c0_16] : memref<2x128xf32, #tpu.memory_space<vmem>>, vector<2x128xf32>
    tpu.vector_store %arg7[%c0_15, %c0_16], %17 {strides = array<i32>} : memref<2x128xf32, #tpu.memory_space<vmem>>, vector<2x128xf32>,
    return
  }
}

</mosaic_0001>

<llo_original>
// kernel: cnn2ch_forward.1
$region0: #{cnn2ch_forward.1}
  #allocation0 [shape = 'u32[]', space=smem, size = 0x4, offset = 0x4, fixed_abs, tag = 'smem constant byte address 0x4 - core index']
  #allocation1 [shape = 'u32[144,128]{1,0:T(1,128)}', space=vmem, size = 0x12000, scoped, tag = 'internal scratch']
  %s0 = inlined_call_operand.vmem [shape: f32[2,64], index: 0, kind: input, shape index: {}]
  %s1 = inlined_call_operand.hbm [shape: f32[64,256], index: 1, kind: input, shape index: {}]
  %s2 = inlined_call_operand.vmem [shape: f32[1,256], index: 2, kind: input, shape index: {}]
  %s3 = inlined_call_operand.hbm [shape: f32[256,1024], index: 3, kind: input, shape index: {}]
  %s4 = inlined_call_operand.vmem [shape: f32[1,1024], index: 4, kind: input, shape index: {}]
  %s5 = inlined_call_operand.hbm [shape: f32[1024,128], index: 5, kind: input, shape index: {}]
  %s6 = inlined_call_operand.vmem [shape: f32[1,128], index: 6, kind: input, shape index: {}]
  %s7 = inlined_call_operand.hbm [shape: f32[2,128], index: 7, kind: output, shape index: {}]
  %s8 = sld [smem:[#allocation0]]
  $region50: #{cnn2ch_forward.1} parent=0
    _
  %s10 = ssub.s32 1, %s8
  %s11 = scalar_select 0, %s10, %s8
  $region1: #{cnn2ch_forward.1} parent=0
    #allocation2 [shape = 'u8[65536]{0}', space=vmem, size = 0x10000, scoped, tag = 'input window, operand 1, single buffered']
    #allocation3 [shape = 's32[1]{0}', space=sflag, size = 0x4, scoped, tag = 'scoped memory for cnn2ch_forward.1']
    #allocation4 [shape = 's32[1]{0}', space=sflag, size = 0x4, scoped, tag = 'scoped memory for cnn2ch_forward.1']
    #allocation5 [shape = 'u8[1048576]{0}', space=vmem, size = 0x100000, scoped, tag = 'input window, operand 3, single buffered']
    #allocation6 [shape = 's32[1]{0}', space=sflag, size = 0x4, scoped, tag = 'scoped memory for cnn2ch_forward.1']
    #allocation7 [shape = 'u8[524288]{0}', space=vmem, size = 0x80000, scoped, tag = 'input window, operand 5, single buffered']
    #allocation8 [shape = 'u8[1024]{0}', space=vmem, size = 0x400, scoped, tag = 'output window, operand 0, single buffered']
    %12 = vsyncpa [#allocation3], 0
    %13 = vsyncpa [#allocation6], 0
    %14 = vsyncpa [#allocation4], 0
    // Predicated region
    $region2: #{cnn2ch_forward.1} parent=1 // pred_check
      _
    $region3: #{cnn2ch_forward.1} parent=1 // pred_check_branch
      %16 = sbr.rel (0) target = $region5
    $region4: #{cnn2ch_forward.1} parent=1 // pred_region
      _
    $region5: #{cnn2ch_forward.1} parent=1 // pred_fallthru
      _
    // Predicated region
    $region6: #{cnn2ch_forward.1} parent=1 // pred_check
      _
    $region7: #{cnn2ch_forward.1} parent=1 // pred_check_branch
      %18 = sbr.rel (0) target = $region9
    $region8: #{cnn2ch_forward.1} parent=1 // pred_region
      %s20 = ssub.s32 2048, 2048
      %21 = vsyncadd [#allocation3], %s20
      %s22 = sshll.u32 [#allocation2], 4
      %s23 = int_to_ptr.vmem [resolvable:$true] %s22
      %28 = dma.hbm_to_vmem [thread:$0]  %s1, 2048, %s23, [#allocation3], 256, 256, 16
    $region9: #{cnn2ch_forward.1} parent=1 // pred_fallthru
      _
    // Predicated region
    $region10: #{cnn2ch_forward.1} parent=1 // pred_check
      _
    $region11: #{cnn2ch_forward.1} parent=1 // pred_check_branch
      %30 = sbr.rel (0) target = $region13
    $region12: #{cnn2ch_forward.1} parent=1 // pred_region
      _
    $region13: #{cnn2ch_forward.1} parent=1 // pred_fallthru
      _
    // Predicated region
    $region14: #{cnn2ch_forward.1} parent=1 // pred_check
      _
    $region15: #{cnn2ch_forward.1} parent=1 // pred_check_branch
      %32 = sbr.rel (0) target = $region17
    $region16: #{cnn2ch_forward.1} parent=1 // pred_region
      %s34 = ssub.s32 32768, 32768
      %35 = vsyncadd [#allocation6], %s34
      %s36 = sshll.u32 [#allocation5], 4
      %s37 = int_to_ptr.vmem [resolvable:$true] %s36
      %42 = dma.hbm_to_vmem [thread:$0]  %s3, 32768, %s37, [#allocation6], 1024, 1024, 64
    $region17: #{cnn2ch_forward.1} parent=1 // pred_fallthru
      _
    // Predicated region
    $region18: #{cnn2ch_forward.1} parent=1 // pred_check
      _
    $region19: #{cnn2ch_forward.1} parent=1 // pred_check_branch
      %44 = sbr.rel (0) target = $region21
    $region20: #{cnn2ch_forward.1} parent=1 // pred_region
      _
    $region21: #{cnn2ch_forward.1} parent=1 // pred_fallthru
      _
    // Predicated region
    $region22: #{cnn2ch_forward.1} parent=1 // pred_check
      _
    $region23: #{cnn2ch_forward.1} parent=1 // pred_check_branch
      %46 = sbr.rel (0) target = $region25
    $region24: #{cnn2ch_forward.1} parent=1 // pred_region
      %s48 = ssub.s32 16384, 16384
      %49 = vsyncadd [#allocation6], %s48
      %s50 = sshll.u32 [#allocation7], 4
      %s51 = int_to_ptr.vmem [resolvable:$true] %s50
      %56 = dma.hbm_to_vmem [thread:$0]  %s5, 16384, %s51, [#allocation6], 128, 128, 8
    $region25: #{cnn2ch_forward.1} parent=1 // pred_fallthru
      _
    // Predicated region
    $region26: #{cnn2ch_forward.1} parent=1 // pred_check
      _
    $region27: #{cnn2ch_forward.1} parent=1 // pred_check_branch
      %58 = sbr.rel (0) target = $region29
    $region28: #{cnn2ch_forward.1} parent=1 // pred_region
      _
    $region29: #{cnn2ch_forward.1} parent=1 // pred_fallthru
      _
    // Predicated region
    $region30: #{cnn2ch_forward.1} parent=1 // pred_check
      _
    $region31: #{cnn2ch_forward.1} parent=1 // pred_check_branch
      %60 = sbr.rel (0) target = $region33
    $region32: #{cnn2ch_forward.1} parent=1 // pred_region
      %61 = dma.done [#allocation3], 2048
    $region33: #{cnn2ch_forward.1} parent=1 // pred_fallthru
      _
    // Predicated region
    $region34: #{cnn2ch_forward.1} parent=1 // pred_check
      _
    $region35: #{cnn2ch_forward.1} parent=1 // pred_check_branch
      %63 = sbr.rel (0) target = $region37
    $region36: #{cnn2ch_forward.1} parent=1 // pred_region
      %64 = dma.done [#allocation6], 32768
    $region37: #{cnn2ch_forward.1} parent=1 // pred_fallthru
      _
    // Predicated region
    $region38: #{cnn2ch_forward.1} parent=1 // pred_check
      _
    $region39: #{cnn2ch_forward.1} parent=1 // pred_check_branch
      %66 = sbr.rel (0) target = $region41
    $region40: #{cnn2ch_forward.1} parent=1 // pred_region
      %67 = dma.done [#allocation6], 16384
    $region41: #{cnn2ch_forward.1} parent=1 // pred_fallthru
      _
    %v68 = vld [vmem:[%s0] sm:$0x3]
    %v69 = vld [vmem:[#allocation2] sm:$0xff]
    %v70 = vld [vmem:[#allocation2 + $0x8] sm:$0xff]
    %v71 = vld [vmem:[#allocation2 + $0x10] sm:$0xff]
    %v72 = vld [vmem:[#allocation2 + $0x18] sm:$0xff]
    %v73 = vld [vmem:[#allocation2 + $0x20] sm:$0xff]
    %v74 = vld [vmem:[#allocation2 + $0x28] sm:$0xff]
    %v75 = vld [vmem:[#allocation2 + $0x30] sm:$0xff]
    %v76 = vld [vmem:[#allocation2 + $0x38] sm:$0xff]
    %v77 = vld [vmem:[#allocation2 + $0x40] sm:$0xff]
    %v78 = vld [vmem:[#allocation2 + $0x48] sm:$0xff]
    %v79 = vld [vmem:[#allocation2 + $0x50] sm:$0xff]
    %v80 = vld [vmem:[#allocation2 + $0x58] sm:$0xff]
    %v81 = vld [vmem:[#allocation2 + $0x60] sm:$0xff]
    %v82 = vld [vmem:[#allocation2 + $0x68] sm:$0xff]
    %v83 = vld [vmem:[#allocation2 + $0x70] sm:$0xff]
    %v84 = vld [vmem:[#allocation2 + $0x78] sm:$0xff]
    %v85 = vld [vmem:[%s2] sm:$0x3]
    %v87 = vlaneseq
    %v88 = vshrl.u32 %v87, 7
    %v89 = vsub.s32 0, %v88
    %v90 = vrot.slane %v85, %v89
    %v91 = vlaneseq
    %v92 = vshrl.u32 %v91, 7
    %v93 = vsub.s32 1, %v92
    %v94 = vrot.slane %v85, %v93
    %vm97 = vcmask 523264
    %v99 = vsel %vm97, %v68, 0
    %101 = vmatprep.subr.mxu0 %v70
    %102 = vmatpush1.msra.mxu0 %v69
    %103 = vmatprep.subr.mxu0 %v72
    %104 = vmatpush1.msra.mxu0 %v71
    %105 = vmatprep.subr.mxu0 %v74
    %106 = vmatpush1.msra.mxu0 %v73
    %107 = vmatprep.subr.mxu0 %v76
    %108 = vmatpush1.msra.mxu0 %v75
    %109 = vmatprep.subr.mxu0 %v78
    %110 = vmatpush1.msra.mxu0 %v77
    %111 = vmatprep.subr.mxu0 %v80
    %112 = vmatpush1.msra.mxu0 %v79
    %113 = vmatprep.subr.mxu0 %v82
    %114 = vmatpush1.msra.mxu0 %v81
    %115 = vmatprep.subr.mxu0 %v84
    %116 = vmatpush1.msra.mxu0 %v83
    %117 = vmatprep.subr.mxu0 0.0
    %118 = vmatpush1.msra.mxu0 0.0
    %119 = vmatprep.subr.mxu0 0.0
    %120 = vmatpush1.msra.mxu0 0.0
    %121 = vmatprep.subr.mxu0 0.0
    %122 = vmatpush1.msra.mxu0 0.0
    %123 = vmatprep.subr.mxu0 0.0
    %124 = vmatpush1.msra.mxu0 0.0
    %125 = vmatprep.subr.mxu0 0.0
    %126 = vmatpush1.msra.mxu0 0.0
    %127 = vmatprep.subr.mxu0 0.0
    %128 = vmatpush1.msra.mxu0 0.0
    %129 = vmatprep.subr.mxu0 0.0
    %130 = vmatpush1.msra.mxu0 0.0
    %131 = vmatprep.subr.mxu0 0.0
    %132 = vmatpush1.msra.mxu0 0.0
    %133 = vmatprep.subr.mxu0 0.0
    %134 = vmatpush1.msra.mxu0 0.0
    %135 = vmatprep.subr.mxu0 0.0
    %136 = vmatpush1.msra.mxu0 0.0
    %137 = vmatprep.subr.mxu0 0.0
    %138 = vmatpush1.msra.mxu0 0.0
    %139 = vmatprep.subr.mxu0 0.0
    %140 = vmatpush1.msra.mxu0 0.0
    %141 = vmatprep.subr.mxu0 0.0
    %142 = vmatpush1.msra.mxu0 0.0
    %143 = vmatprep.subr.mxu0 0.0
    %144 = vmatpush1.msra.mxu0 0.0
    %145 = vmatprep.subr.mxu0 0.0
    %146 = vmatpush1.msra.mxu0 0.0
    %147 = vmatprep.subr.mxu0 0.0
    %148 = vmatpush1.msra.mxu0 0.0
    %149 = vmatprep.subr.mxu0 0.0
    %150 = vmatpush1.msra.mxu0 0.0
    %151 = vmatprep.subr.mxu0 0.0
    %152 = vmatpush1.msra.mxu0 0.0
    %153 = vmatprep.subr.mxu0 0.0
    %154 = vmatpush1.msra.mxu0 0.0
    %155 = vmatprep.subr.mxu0 0.0
    %156 = vmatpush1.msra.mxu0 0.0
    %157 = vmatprep.subr.mxu0 0.0
    %158 = vmatpush1.msra.mxu0 0.0
    %159 = vmatprep.subr.mxu0 0.0
    %160 = vmatpush1.msra.mxu0 0.0
    %161 = vmatprep.subr.mxu0 0.0
    %162 = vmatpush1.msra.mxu0 0.0
    %163 = vmatprep.subr.mxu0 0.0
    %164 = vmatpush1.msra.mxu0 0.0
    %165 = vmatprep.mubr.f32.mxu0 0.0
    %166 = vmatmul.mubr.f32.gmra.mrb[0].mxu0 %v99
    %v167 = vpop.f32.mrb[0].mxu0
    %v168 = vadd.f32 %v90, %v167
    %v169 = vpop.f32.mrb[0].mxu0
    %v170 = vadd.f32 %v94, %v169
    %171 = vdwg.mxu0
    %v172 = vtanh.pop %v168
    %v173 = vtanh.pop %v170
    %v174 = vld [vmem:[#allocation5] sm:$0xff]
    %v175 = vld [vmem:[#allocation5 + $0x8] sm:$0xff]
    %v176 = vld [vmem:[#allocation5 + $0x10] sm:$0xff]
    %v177 = vld [vmem:[#allocation5 + $0x18] sm:$0xff]
    %v178 = vld [vmem:[#allocation5 + $0x20] sm:$0xff]
    %v179 = vld [vmem:[#allocation5 + $0x28] sm:$0xff]
    %v180 = vld [vmem:[#allocation5 + $0x30] sm:$0xff]
    %v181 = vld [vmem:[#allocation5 + $0x38] sm:$0xff]
    %v182 = vld [vmem:[#allocation5 + $0x40] sm:$0xff]
    %v183 = vld [vmem:[#allocation5 + $0x48] sm:$0xff]
    %v184 = vld [vmem:[#allocation5 + $0x50] sm:$0xff]
    %v185 = vld [vmem:[#allocation5 + $0x58] sm:$0xff]
    %v186 = vld [vmem:[#allocation5 + $0x60] sm:$0xff]
    %v187 = vld [vmem:[#allocation5 + $0x68] sm:$0xff]
    %v188 = vld [vmem:[#allocation5 + $0x70] sm:$0xff]
    %v189 = vld [vmem:[#allocation5 + $0x78] sm:$0xff]
    %v190 = vld [vmem:[#allocation5 + $0x80] sm:$0xff]
    %v191 = vld [vmem:[#allocation5 + $0x88] sm:$0xff]
    %v192 = vld [vmem:[#allocation5 + $0x90] sm:$0xff]
    %v193 = vld [vmem:[#allocation5 + $0x98] sm:$0xff]
    %v194 = vld [vmem:[#allocation5 + $0xa0] sm:$0xff]
    %v195 = vld [vmem:[#allocation5 + $0xa8] sm:$0xff]
    %v196 = vld [vmem:[#allocation5 + $0xb0] sm:$0xff]
    %v197 = vld [vmem:[#allocation5 + $0xb8] sm:$0xff]
    %v198 = vld [vmem:[#allocation5 + $0xc0] sm:$0xff]
    %v199 = vld [vmem:[#allocation5 + $0xc8] sm:$0xff]
    %v200 = vld [vmem:[#allocation5 + $0xd0] sm:$0xff]
    %v201 = vld [vmem:[#allocation5 + $0xd8] sm:$0xff]
    %v202 = vld [vmem:[#allocation5 + $0xe0] sm:$0xff]
    %v203 = vld [vmem:[#allocation5 + $0xe8] sm:$0xff]
    %v204 = vld [vmem:[#allocation5 + $0xf0] sm:$0xff]
    %v205 = vld [vmem:[#allocation5 + $0xf8] sm:$0xff]
    %v206 = vld [vmem:[#allocation5 + $0x100] sm:$0xff]
    %v207 = vld [vmem:[#allocation5 + $0x108] sm:$0xff]
    %v208 = vld [vmem:[#allocation5 + $0x110] sm:$0xff]
    %v209 = vld [vmem:[#allocation5 + $0x118] sm:$0xff]
    %v210 = vld [vmem:[#allocation5 + $0x120] sm:$0xff]
    %v211 = vld [vmem:[#allocation5 + $0x128] sm:$0xff]
    %v212 = vld [vmem:[#allocation5 + $0x130] sm:$0xff]
    %v213 = vld [vmem:[#allocation5 + $0x138] sm:$0xff]
    %v214 = vld [vmem:[#allocation5 + $0x140] sm:$0xff]
    %v215 = vld [vmem:[#allocation5 + $0x148] sm:$0xff]
    %v216 = vld [vmem:[#allocation5 + $0x150] sm:$0xff]
    %v217 = vld [vmem:[#allocation5 + $0x158] sm:$0xff]
    %v218 = vld [vmem:[#allocation5 + $0x160] sm:$0xff]
    %v219 = vld [vmem:[#allocation5 + $0x168] sm:$0xff]
    %v220 = vld [vmem:[#allocation5 + $0x170] sm:$0xff]
    %v221 = vld [vmem:[#allocation5 + $0x178] sm:$0xff]
    %v222 = vld [vmem:[#allocation5 + $0x180] sm:$0xff]
    %v223 = vld [vmem:[#allocation5 + $0x188] sm:$0xff]
    %v224 = vld [vmem:[#allocation5 + $0x190] sm:$0xff]
    %v225 = vld [vmem:[#allocation5 + $0x198] sm:$0xff]
    %v226 = vld [vmem:[#allocation5 + $0x1a0] sm:$0xff]
    %v227 = vld [vmem:[#allocation5 + $0x1a8] sm:$0xff]
    %v228 = vld [vmem:[#allocation5 + $0x1b0] sm:$0xff]
    %v229 = vld [vmem:[#allocation5 + $0x1b8] sm:$0xff]
    %v230 = vld [vmem:[#allocation5 + $0x1c0] sm:$0xff]
    %v231 = vld [vmem:[#allocation5 + $0x1c8] sm:$0xff]
    %v232 = vld [vmem:[#allocation5 + $0x1d0] sm:$0xff]
    %v233 = vld [vmem:[#allocation5 + $0x1d8] sm:$0xff]
    %v234 = vld [vmem:[#allocation5 + $0x1e0] sm:$0xff]
    %v235 = vld [vmem:[#allocation5 + $0x1e8] sm:$0xff]
    %v236 = vld [vmem:[#allocation5 + $0x1f0] sm:$0xff]
    %v237 = vld [vmem:[#allocation5 + $0x1f8] sm:$0xff]
    %v238 = vld [vmem:[#allocation5 + $0x200] sm:$0xff]
    %v239 = vld [vmem:[#allocation5 + $0x208] sm:$0xff]
    %v240 = vld [vmem:[#allocation5 + $0x210] sm:$0xff]
    %v241 = vld [vmem:[#allocation5 + $0x218] sm:$0xff]
    %v242 = vld [vmem:[#allocation5 + $0x220] sm:$0xff]
    %v243 = vld [vmem:[#allocation5 + $0x228] sm:$0xff]
    %v244 = vld [vmem:[#allocation5 + $0x230] sm:$0xff]
    %v245 = vld [vmem:[#allocation5 + $0x238] sm:$0xff]
    %v246 = vld [vmem:[#allocation5 + $0x240] sm:$0xff]
    %v247 = vld [vmem:[#allocation5 + $0x248] sm:$0xff]
    %v248 = vld [vmem:[#allocation5 + $0x250] sm:$0xff]
    %v249 = vld [vmem:[#allocation5 + $0x258] sm:$0xff]
    %v250 = vld [vmem:[#allocation5 + $0x260] sm:$0xff]
    %v251 = vld [vmem:[#allocation5 + $0x268] sm:$0xff]
    %v252 = vld [vmem:[#allocation5 + $0x270] sm:$0xff]
    %v253 = vld [vmem:[#allocation5 + $0x278] sm:$0xff]
    %v254 = vld [vmem:[#allocation5 + $0x280] sm:$0xff]
    %v255 = vld [vmem:[#allocation5 + $0x288] sm:$0xff]
    %v256 = vld [vmem:[#allocation5 + $0x290] sm:$0xff]
    %v257 = vld [vmem:[#allocation5 + $0x298] sm:$0xff]
    %v258 = vld [vmem:[#allocation5 + $0x2a0] sm:$0xff]
    %v259 = vld [vmem:[#allocation5 + $0x2a8] sm:$0xff]
    %v260 = vld [vmem:[#allocation5 + $0x2b0] sm:$0xff]
    %v261 = vld [vmem:[#allocation5 + $0x2b8] sm:$0xff]
    %v262 = vld [vmem:[#allocation5 + $0x2c0] sm:$0xff]
    %v263 = vld [vmem:[#allocation5 + $0x2c8] sm:$0xff]
    %v264 = vld [vmem:[#allocation5 + $0x2d0] sm:$0xff]
    %v265 = vld [vmem:[#allocation5 + $0x2d8] sm:$0xff]
    %v266 = vld [vmem:[#allocation5 + $0x2e0] sm:$0xff]
    %v267 = vld [vmem:[#allocation5 + $0x2e8] sm:$0xff]
    %v268 = vld [vmem:[#allocation5 + $0x2f0] sm:$0xff]
    %v269 = vld [vmem:[#allocation5 + $0x2f8] sm:$0xff]
    %v270 = vld [vmem:[#allocation5 + $0x300] sm:$0xff]
    %v271 = vld [vmem:[#allocation5 + $0x308] sm:$0xff]
    %v272 = vld [vmem:[#allocation5 + $0x310] sm:$0xff]
    %v273 = vld [vmem:[#allocation5 + $0x318] sm:$0xff]
    %v274 = vld [vmem:[#allocation5 + $0x320] sm:$0xff]
    %v275 = vld [vmem:[#allocation5 + $0x328] sm:$0xff]
    %v276 = vld [vmem:[#allocation5 + $0x330] sm:$0xff]
    %v277 = vld [vmem:[#allocation5 + $0x338] sm:$0xff]
    %v278 = vld [vmem:[#allocation5 + $0x340] sm:$0xff]
    %v279 = vld [vmem:[#allocation5 + $0x348] sm:$0xff]
    %v280 = vld [vmem:[#allocation5 + $0x350] sm:$0xff]
    %v281 = vld [vmem:[#allocation5 + $0x358] sm:$0xff]
    %v282 = vld [vmem:[#allocation5 + $0x360] sm:$0xff]
    %v283 = vld [vmem:[#allocation5 + $0x368] sm:$0xff]
    %v284 = vld [vmem:[#allocation5 + $0x370] sm:$0xff]
    %v285 = vld [vmem:[#allocation5 + $0x378] sm:$0xff]
    %v286 = vld [vmem:[#allocation5 + $0x380] sm:$0xff]
    %v287 = vld [vmem:[#allocation5 + $0x388] sm:$0xff]
    %v288 = vld [vmem:[#allocation5 + $0x390] sm:$0xff]
    %v289 = vld [vmem:[#allocation5 + $0x398] sm:$0xff]
    %v290 = vld [vmem:[#allocation5 + $0x3a0] sm:$0xff]
    %v291 = vld [vmem:[#allocation5 + $0x3a8] sm:$0xff]
    %v292 = vld [vmem:[#allocation5 + $0x3b0] sm:$0xff]
    %v293 = vld [vmem:[#allocation5 + $0x3b8] sm:$0xff]
    %v294 = vld [vmem:[#allocation5 + $0x3c0] sm:$0xff]
    %v295 = vld [vmem:[#allocation5 + $0x3c8] sm:$0xff]
    %v296 = vld [vmem:[#allocation5 + $0x3d0] sm:$0xff]
    %v297 = vld [vmem:[#allocation5 + $0x3d8] sm:$0xff]
    %v298 = vld [vmem:[#allocation5 + $0x3e0] sm:$0xff]
    %v299 = vld [vmem:[#allocation5 + $0x3e8] sm:$0xff]
    %v300 = vld [vmem:[#allocation5 + $0x3f0] sm:$0xff]
    %v301 = vld [vmem:[#allocation5 + $0x3f8] sm:$0xff]
    %v302 = vld [vmem:[#allocation5 + $0x400] sm:$0xff]
    %v303 = vld [vmem:[#allocation5 + $0x408] sm:$0xff]
    %v304 = vld [vmem:[#allocation5 + $0x410] sm:$0xff]
    %v305 = vld [vmem:[#allocation5 + $0x418] sm:$0xff]
    %v306 = vld [vmem:[#allocation5 + $0x420] sm:$0xff]
    %v307 = vld [vmem:[#allocation5 + $0x428] sm:$0xff]
    %v308 = vld [vmem:[#allocation5 + $0x430] sm:$0xff]
    %v309 = vld [vmem:[#allocation5 + $0x438] sm:$0xff]
    %v310 = vld [vmem:[#allocation5 + $0x440] sm:$0xff]
    %v311 = vld [vmem:[#allocation5 + $0x448] sm:$0xff]
    %v312 = vld [vmem:[#allocation5 + $0x450] sm:$0xff]
    %v313 = vld [vmem:[#allocation5 + $0x458] sm:$0xff]
    %v314 = vld [vmem:[#allocation5 + $0x460] sm:$0xff]
    %v315 = vld [vmem:[#allocation5 + $0x468] sm:$0xff]
    %v316 = vld [vmem:[#allocation5 + $0x470] sm:$0xff]
    %v317 = vld [vmem:[#allocation5 + $0x478] sm:$0xff]
    %v318 = vld [vmem:[#allocation5 + $0x480] sm:$0xff]
    %v319 = vld [vmem:[#allocation5 + $0x488] sm:$0xff]
    %v320 = vld [vmem:[#allocation5 + $0x490] sm:$0xff]
    %v321 = vld [vmem:[#allocation5 + $0x498] sm:$0xff]
    %v322 = vld [vmem:[#allocation5 + $0x4a0] sm:$0xff]
    %v323 = vld [vmem:[#allocation5 + $0x4a8] sm:$0xff]
    %v324 = vld [vmem:[#allocation5 + $0x4b0] sm:$0xff]
    %v325 = vld [vmem:[#allocation5 + $0x4b8] sm:$0xff]
    %v326 = vld [vmem:[#allocation5 + $0x4c0] sm:$0xff]
    %v327 = vld [vmem:[#allocation5 + $0x4c8] sm:$0xff]
    %v328 = vld [vmem:[#allocation5 + $0x4d0] sm:$0xff]
    %v329 = vld [vmem:[#allocation5 + $0x4d8] sm:$0xff]
    %v330 = vld [vmem:[#allocation5 + $0x4e0] sm:$0xff]
    %v331 = vld [vmem:[#allocation5 + $0x4e8] sm:$0xff]
    %v332 = vld [vmem:[#allocation5 + $0x4f0] sm:$0xff]
    %v333 = vld [vmem:[#allocation5 + $0x4f8] sm:$0xff]
    %v334 = vld [vmem:[#allocation5 + $0x500] sm:$0xff]
    %v335 = vld [vmem:[#allocation5 + $0x508] sm:$0xff]
    %v336 = vld [vmem:[#allocation5 + $0x510] sm:$0xff]
    %v337 = vld [vmem:[#allocation5 + $0x518] sm:$0xff]
    %v338 = vld [vmem:[#allocation5 + $0x520] sm:$0xff]
    %v339 = vld [vmem:[#allocation5 + $0x528] sm:$0xff]
    %v340 = vld [vmem:[#allocation5 + $0x530] sm:$0xff]
    %v341 = vld [vmem:[#allocation5 + $0x538] sm:$0xff]
    %v342 = vld [vmem:[#allocation5 + $0x540] sm:$0xff]
    %v343 = vld [vmem:[#allocation5 + $0x548] sm:$0xff]
    %v344 = vld [vmem:[#allocation5 + $0x550] sm:$0xff]
    %v345 = vld [vmem:[#allocation5 + $0x558] sm:$0xff]
    %v346 = vld [vmem:[#allocation5 + $0x560] sm:$0xff]
    %v347 = vld [vmem:[#allocation5 + $0x568] sm:$0xff]
    %v348 = vld [vmem:[#allocation5 + $0x570] sm:$0xff]
    %v349 = vld [vmem:[#allocation5 + $0x578] sm:$0xff]
    %v350 = vld [vmem:[#allocation5 + $0x580] sm:$0xff]
    %v351 = vld [vmem:[#allocation5 + $0x588] sm:$0xff]
    %v352 = vld [vmem:[#allocation5 + $0x590] sm:$0xff]
    %v353 = vld [vmem:[#allocation5 + $0x598] sm:$0xff]
    %v354 = vld [vmem:[#allocation5 + $0x5a0] sm:$0xff]
    %v355 = vld [vmem:[#allocation5 + $0x5a8] sm:$0xff]
    %v356 = vld [vmem:[#allocation5 + $0x5b0] sm:$0xff]
    %v357 = vld [vmem:[#allocation5 + $0x5b8] sm:$0xff]
    %v358 = vld [vmem:[#allocation5 + $0x5c0] sm:$0xff]
    %v359 = vld [vmem:[#allocation5 + $0x5c8] sm:$0xff]
    %v360 = vld [vmem:[#allocation5 + $0x5d0] sm:$0xff]
    %v361 = vld [vmem:[#allocation5 + $0x5d8] sm:$0xff]
    %v362 = vld [vmem:[#allocation5 + $0x5e0] sm:$0xff]
    %v363 = vld [vmem:[#allocation5 + $0x5e8] sm:$0xff]
    %v364 = vld [vmem:[#allocation5 + $0x5f0] sm:$0xff]
    %v365 = vld [vmem:[#allocation5 + $0x5f8] sm:$0xff]
    %v366 = vld [vmem:[#allocation5 + $0x600] sm:$0xff]
    %v367 = vld [vmem:[#allocation5 + $0x608] sm:$0xff]
    %v368 = vld [vmem:[#allocation5 + $0x610] sm:$0xff]
    %v369 = vld [vmem:[#allocation5 + $0x618] sm:$0xff]
    %v370 = vld [vmem:[#allocation5 + $0x620] sm:$0xff]
    %v371 = vld [vmem:[#allocation5 + $0x628] sm:$0xff]
    %v372 = vld [vmem:[#allocation5 + $0x630] sm:$0xff]
    %v373 = vld [vmem:[#allocation5 + $0x638] sm:$0xff]
    %v374 = vld [vmem:[#allocation5 + $0x640] sm:$0xff]
    %v375 = vld [vmem:[#allocation5 + $0x648] sm:$0xff]
    %v376 = vld [vmem:[#allocation5 + $0x650] sm:$0xff]
    %v377 = vld [vmem:[#allocation5 + $0x658] sm:$0xff]
    %v378 = vld [vmem:[#allocation5 + $0x660] sm:$0xff]
    %v379 = vld [vmem:[#allocation5 + $0x668] sm:$0xff]
    %v380 = vld [vmem:[#allocation5 + $0x670] sm:$0xff]
    %v381 = vld [vmem:[#allocation5 + $0x678] sm:$0xff]
    %v382 = vld [vmem:[#allocation5 + $0x680] sm:$0xff]
    %v383 = vld [vmem:[#allocation5 + $0x688] sm:$0xff]
    %v384 = vld [vmem:[#allocation5 + $0x690] sm:$0xff]
    %v385 = vld [vmem:[#allocation5 + $0x698] sm:$0xff]
    %v386 = vld [vmem:[#allocation5 + $0x6a0] sm:$0xff]
    %v387 = vld [vmem:[#allocation5 + $0x6a8] sm:$0xff]
    %v388 = vld [vmem:[#allocation5 + $0x6b0] sm:$0xff]
    %v389 = vld [vmem:[#allocation5 + $0x6b8] sm:$0xff]
    %v390 = vld [vmem:[#allocation5 + $0x6c0] sm:$0xff]
    %v391 = vld [vmem:[#allocation5 + $0x6c8] sm:$0xff]
    %v392 = vld [vmem:[#allocation5 + $0x6d0] sm:$0xff]
    %v393 = vld [vmem:[#allocation5 + $0x6d8] sm:$0xff]
    %v394 = vld [vmem:[#allocation5 + $0x6e0] sm:$0xff]
    %v395 = vld [vmem:[#allocation5 + $0x6e8] sm:$0xff]
    %v396 = vld [vmem:[#allocation5 + $0x6f0] sm:$0xff]
    %v397 = vld [vmem:[#allocation5 + $0x6f8] sm:$0xff]
    %v398 = vld [vmem:[#allocation5 + $0x700] sm:$0xff]
    %v399 = vld [vmem:[#allocation5 + $0x708] sm:$0xff]
    %v400 = vld [vmem:[#allocation5 + $0x710] sm:$0xff]
    %v401 = vld [vmem:[#allocation5 + $0x718] sm:$0xff]
    %v402 = vld [vmem:[#allocation5 + $0x720] sm:$0xff]
    %v403 = vld [vmem:[#allocation5 + $0x728] sm:$0xff]
    %v404 = vld [vmem:[#allocation5 + $0x730] sm:$0xff]
    %v405 = vld [vmem:[#allocation5 + $0x738] sm:$0xff]
    %v406 = vld [vmem:[#allocation5 + $0x740] sm:$0xff]
    %v407 = vld [vmem:[#allocation5 + $0x748] sm:$0xff]
    %v408 = vld [vmem:[#allocation5 + $0x750] sm:$0xff]
    %v409 = vld [vmem:[#allocation5 + $0x758] sm:$0xff]
    %v410 = vld [vmem:[#allocation5 + $0x760] sm:$0xff]
    %v411 = vld [vmem:[#allocation5 + $0x768] sm:$0xff]
    %v412 = vld [vmem:[#allocation5 + $0x770] sm:$0xff]
    %v413 = vld [vmem:[#allocation5 + $0x778] sm:$0xff]
    %v414 = vld [vmem:[#allocation5 + $0x780] sm:$0xff]
    %v415 = vld [vmem:[#allocation5 + $0x788] sm:$0xff]
    %v416 = vld [vmem:[#allocation5 + $0x790] sm:$0xff]
    %v417 = vld [vmem:[#allocation5 + $0x798] sm:$0xff]
    %v418 = vld [vmem:[#allocation5 + $0x7a0] sm:$0xff]
    %v419 = vld [vmem:[#allocation5 + $0x7a8] sm:$0xff]
    %v420 = vld [vmem:[#allocation5 + $0x7b0] sm:$0xff]
    %v421 = vld [vmem:[#allocation5 + $0x7b8] sm:$0xff]
    %v422 = vld [vmem:[#allocation5 + $0x7c0] sm:$0xff]
    %v423 = vld [vmem:[#allocation5 + $0x7c8] sm:$0xff]
    %v424 = vld [vmem:[#allocation5 + $0x7d0] sm:$0xff]
    %v425 = vld [vmem:[#allocation5 + $0x7d8] sm:$0xff]
    %v426 = vld [vmem:[#allocation5 + $0x7e0] sm:$0xff]
    %v427 = vld [vmem:[#allocation5 + $0x7e8] sm:$0xff]
    %v428 = vld [vmem:[#allocation5 + $0x7f0] sm:$0xff]
    %v429 = vld [vmem:[#allocation5 + $0x7f8] sm:$0xff]
    %v430 = vld [vmem:[%s4] sm:$0xff]
    %v432 = vlaneseq
    %v433 = vshrl.u32 %v432, 7
    %v434 = vsub.s32 0, %v433
    %v435 = vrot.slane %v430, %v434
    %v436 = vlaneseq
    %v437 = vshrl.u32 %v436, 7
    %v438 = vsub.s32 1, %v437
    %v439 = vrot.slane %v430, %v438
    %v440 = vlaneseq
    %v441 = vshrl.u32 %v440, 7
    %v442 = vsub.s32 2, %v441
    %v443 = vrot.slane %v430, %v442
    %v444 = vlaneseq
    %v445 = vshrl.u32 %v444, 7
    %v446 = vsub.s32 3, %v445
    %v447 = vrot.slane %v430, %v446
    %v448 = vlaneseq
    %v449 = vshrl.u32 %v448, 7
    %v450 = vsub.s32 4, %v449
    %v451 = vrot.slane %v430, %v450
    %v452 = vlaneseq
    %v453 = vshrl.u32 %v452, 7
    %v454 = vsub.s32 5, %v453
    %v455 = vrot.slane %v430, %v454
    %v456 = vlaneseq
    %v457 = vshrl.u32 %v456, 7
    %v458 = vsub.s32 6, %v457
    %v459 = vrot.slane %v430, %v458
    %v460 = vlaneseq
    %v461 = vshrl.u32 %v460, 7
    %v462 = vsub.s32 7, %v461
    %v463 = vrot.slane %v430, %v462
    %472 = vmatprep.subr.mxu0 %v175
    %473 = vmatpush1.msra.mxu0 %v174
    %474 = vmatprep.subr.mxu0 %v183
    %475 = vmatpush1.msra.mxu0 %v182
    %476 = vmatprep.subr.mxu0 %v191
    %477 = vmatpush1.msra.mxu0 %v190
    %478 = vmatprep.subr.mxu0 %v199
    %479 = vmatpush1.msra.mxu0 %v198
    %480 = vmatprep.subr.mxu0 %v207
    %481 = vmatpush1.msra.mxu0 %v206
    %482 = vmatprep.subr.mxu0 %v215
    %483 = vmatpush1.msra.mxu0 %v214
    %484 = vmatprep.subr.mxu0 %v223
    %485 = vmatpush1.msra.mxu0 %v222
    %486 = vmatprep.subr.mxu0 %v231
    %487 = vmatpush1.msra.mxu0 %v230
    %488 = vmatprep.subr.mxu0 %v239
    %489 = vmatpush1.msra.mxu0 %v238
    %490 = vmatprep.subr.mxu0 %v247
    %491 = vmatpush1.msra.mxu0 %v246
    %492 = vmatprep.subr.mxu0 %v255
    %493 = vmatpush1.msra.mxu0 %v254
    %494 = vmatprep.subr.mxu0 %v263
    %495 = vmatpush1.msra.mxu0 %v262
    %496 = vmatprep.subr.mxu0 %v271
    %497 = vmatpush1.msra.mxu0 %v270
    %498 = vmatprep.subr.mxu0 %v279
    %499 = vmatpush1.msra.mxu0 %v278
    %500 = vmatprep.subr.mxu0 %v287
    %501 = vmatpush1.msra.mxu0 %v286
    %502 = vmatprep.subr.mxu0 %v295
    %503 = vmatpush1.msra.mxu0 %v294
    %504 = vmatprep.subr.mxu0 %v303
    %505 = vmatpush1.msra.mxu0 %v302
    %506 = vmatprep.subr.mxu0 %v311
    %507 = vmatpush1.msra.mxu0 %v310
    %508 = vmatprep.subr.mxu0 %v319
    %509 = vmatpush1.msra.mxu0 %v318
    %510 = vmatprep.subr.mxu0 %v327
    %511 = vmatpush1.msra.mxu0 %v326
    %512 = vmatprep.subr.mxu0 %v335
    %513 = vmatpush1.msra.mxu0 %v334
    %514 = vmatprep.subr.mxu0 %v343
    %515 = vmatpush1.msra.mxu0 %v342
    %516 = vmatprep.subr.mxu0 %v351
    %517 = vmatpush1.msra.mxu0 %v350
    %518 = vmatprep.subr.mxu0 %v359
    %519 = vmatpush1.msra.mxu0 %v358
    %520 = vmatprep.subr.mxu0 %v367
    %521 = vmatpush1.msra.mxu0 %v366
    %522 = vmatprep.subr.mxu0 %v375
    %523 = vmatpush1.msra.mxu0 %v374
    %524 = vmatprep.subr.mxu0 %v383
    %525 = vmatpush1.msra.mxu0 %v382
    %526 = vmatprep.subr.mxu0 %v391
    %527 = vmatpush1.msra.mxu0 %v390
    %528 = vmatprep.subr.mxu0 %v399
    %529 = vmatpush1.msra.mxu0 %v398
    %530 = vmatprep.subr.mxu0 %v407
    %531 = vmatpush1.msra.mxu0 %v406
    %532 = vmatprep.subr.mxu0 %v415
    %533 = vmatpush1.msra.mxu0 %v414
    %534 = vmatprep.subr.mxu0 %v423
    %535 = vmatpush1.msra.mxu0 %v422
    %536 = vmatprep.mubr.f32.mxu0 %v173
    %537 = vmatmul.mubr.f32.gmra.mrb[0].mxu0 %v172
    %v538 = vpop.f32.mrb[0].mxu0
    %v539 = vadd.f32 %v435, %v538
    %v540 = vpop.f32.mrb[0].mxu0
    %v541 = vadd.f32 %v439, %v540
    %542 = vdwg.mxu0
    %543 = vmatprep.subr.mxu0 %v177
    %544 = vmatpush1.msra.mxu0 %v176
    %545 = vmatprep.subr.mxu0 %v185
    %546 = vmatpush1.msra.mxu0 %v184
    %547 = vmatprep.subr.mxu0 %v193
    %548 = vmatpush1.msra.mxu0 %v192
    %549 = vmatprep.subr.mxu0 %v201
    %550 = vmatpush1.msra.mxu0 %v200
    %551 = vmatprep.subr.mxu0 %v209
    %552 = vmatpush1.msra.mxu0 %v208
    %553 = vmatprep.subr.mxu0 %v217
    %554 = vmatpush1.msra.mxu0 %v216
    %555 = vmatprep.subr.mxu0 %v225
    %556 = vmatpush1.msra.mxu0 %v224
    %557 = vmatprep.subr.mxu0 %v233
    %558 = vmatpush1.msra.mxu0 %v232
    %559 = vmatprep.subr.mxu0 %v241
    %560 = vmatpush1.msra.mxu0 %v240
    %561 = vmatprep.subr.mxu0 %v249
    %562 = vmatpush1.msra.mxu0 %v248
    %563 = vmatprep.subr.mxu0 %v257
    %564 = vmatpush1.msra.mxu0 %v256
    %565 = vmatprep.subr.mxu0 %v265
    %566 = vmatpush1.msra.mxu0 %v264
    %567 = vmatprep.subr.mxu0 %v273
    %568 = vmatpush1.msra.mxu0 %v272
    %569 = vmatprep.subr.mxu0 %v281
    %570 = vmatpush1.msra.mxu0 %v280
    %571 = vmatprep.subr.mxu0 %v289
    %572 = vmatpush1.msra.mxu0 %v288
    %573 = vmatprep.subr.mxu0 %v297
    %574 = vmatpush1.msra.mxu0 %v296
    %575 = vmatprep.subr.mxu0 %v305
    %576 = vmatpush1.msra.mxu0 %v304
    %577 = vmatprep.subr.mxu0 %v313
    %578 = vmatpush1.msra.mxu0 %v312
    %579 = vmatprep.subr.mxu0 %v321
    %580 = vmatpush1.msra.mxu0 %v320
    %581 = vmatprep.subr.mxu0 %v329
    %582 = vmatpush1.msra.mxu0 %v328
    %583 = vmatprep.subr.mxu0 %v337
    %584 = vmatpush1.msra.mxu0 %v336
    %585 = vmatprep.subr.mxu0 %v345
    %586 = vmatpush1.msra.mxu0 %v344
    %587 = vmatprep.subr.mxu0 %v353
    %588 = vmatpush1.msra.mxu0 %v352
    %589 = vmatprep.subr.mxu0 %v361
    %590 = vmatpush1.msra.mxu0 %v360
    %591 = vmatprep.subr.mxu0 %v369
    %592 = vmatpush1.msra.mxu0 %v368
    %593 = vmatprep.subr.mxu0 %v377
    %594 = vmatpush1.msra.mxu0 %v376
    %595 = vmatprep.subr.mxu0 %v385
    %596 = vmatpush1.msra.mxu0 %v384
    %597 = vmatprep.subr.mxu0 %v393
    %598 = vmatpush1.msra.mxu0 %v392
    %599 = vmatprep.subr.mxu0 %v401
    %600 = vmatpush1.msra.mxu0 %v400
    %601 = vmatprep.subr.mxu0 %v409
    %602 = vmatpush1.msra.mxu0 %v408
    %603 = vmatprep.subr.mxu0 %v417
    %604 = vmatpush1.msra.mxu0 %v416
    %605 = vmatprep.subr.mxu0 %v425
    %606 = vmatpush1.msra.mxu0 %v424
    %607 = vmatprep.mubr.f32.mxu0 %v173
    %608 = vmatmul.mubr.f32.gmra.mrb[0].mxu0 %v172
    %v609 = vpop.f32.mrb[0].mxu0
    %v610 = vadd.f32 %v443, %v609
    %v611 = vpop.f32.mrb[0].mxu0
    %v612 = vadd.f32 %v447, %v611
    %613 = vdwg.mxu0
    %614 = vmatprep.subr.mxu0 %v179
    %615 = vmatpush1.msra.mxu0 %v178
    %616 = vmatprep.subr.mxu0 %v187
    %617 = vmatpush1.msra.mxu0 %v186
    %618 = vmatprep.subr.mxu0 %v195
    %619 = vmatpush1.msra.mxu0 %v194
    %620 = vmatprep.subr.mxu0 %v203
    %621 = vmatpush1.msra.mxu0 %v202
    %622 = vmatprep.subr.mxu0 %v211
    %623 = vmatpush1.msra.mxu0 %v210
    %624 = vmatprep.subr.mxu0 %v219
    %625 = vmatpush1.msra.mxu0 %v218
    %626 = vmatprep.subr.mxu0 %v227
    %627 = vmatpush1.msra.mxu0 %v226
    %628 = vmatprep.subr.mxu0 %v235
    %629 = vmatpush1.msra.mxu0 %v234
    %630 = vmatprep.subr.mxu0 %v243
    %631 = vmatpush1.msra.mxu0 %v242
    %632 = vmatprep.subr.mxu0 %v251
    %633 = vmatpush1.msra.mxu0 %v250
    %634 = vmatprep.subr.mxu0 %v259
    %635 = vmatpush1.msra.mxu0 %v258
    %636 = vmatprep.subr.mxu0 %v267
    %637 = vmatpush1.msra.mxu0 %v266
    %638 = vmatprep.subr.mxu0 %v275
    %639 = vmatpush1.msra.mxu0 %v274
    %640 = vmatprep.subr.mxu0 %v283
    %641 = vmatpush1.msra.mxu0 %v282
    %642 = vmatprep.subr.mxu0 %v291
    %643 = vmatpush1.msra.mxu0 %v290
    %644 = vmatprep.subr.mxu0 %v299
    %645 = vmatpush1.msra.mxu0 %v298
    %646 = vmatprep.subr.mxu0 %v307
    %647 = vmatpush1.msra.mxu0 %v306
    %648 = vmatprep.subr.mxu0 %v315
    %649 = vmatpush1.msra.mxu0 %v314
    %650 = vmatprep.subr.mxu0 %v323
    %651 = vmatpush1.msra.mxu0 %v322
    %652 = vmatprep.subr.mxu0 %v331
    %653 = vmatpush1.msra.mxu0 %v330
    %654 = vmatprep.subr.mxu0 %v339
    %655 = vmatpush1.msra.mxu0 %v338
    %656 = vmatprep.subr.mxu0 %v347
    %657 = vmatpush1.msra.mxu0 %v346
    %658 = vmatprep.subr.mxu0 %v355
    %659 = vmatpush1.msra.mxu0 %v354
    %660 = vmatprep.subr.mxu0 %v363
    %661 = vmatpush1.msra.mxu0 %v362
    %662 = vmatprep.subr.mxu0 %v371
    %663 = vmatpush1.msra.mxu0 %v370
    %664 = vmatprep.subr.mxu0 %v379
    %665 = vmatpush1.msra.mxu0 %v378
    %666 = vmatprep.subr.mxu0 %v387
    %667 = vmatpush1.msra.mxu0 %v386
    %668 = vmatprep.subr.mxu0 %v395
    %669 = vmatpush1.msra.mxu0 %v394
    %670 = vmatprep.subr.mxu0 %v403
    %671 = vmatpush1.msra.mxu0 %v402
    %672 = vmatprep.subr.mxu0 %v411
    %673 = vmatpush1.msra.mxu0 %v410
    %674 = vmatprep.subr.mxu0 %v419
    %675 = vmatpush1.msra.mxu0 %v418
    %676 = vmatprep.subr.mxu0 %v427
    %677 = vmatpush1.msra.mxu0 %v426
    %678 = vmatprep.mubr.f32.mxu0 %v173
    %679 = vmatmul.mubr.f32.gmra.mrb[0].mxu0 %v172
    %v680 = vpop.f32.mrb[0].mxu0
    %v681 = vadd.f32 %v451, %v680
    %v682 = vpop.f32.mrb[0].mxu0
    %v683 = vadd.f32 %v455, %v682
    %684 = vdwg.mxu0
    %685 = vmatprep.subr.mxu0 %v181
    %686 = vmatpush1.msra.mxu0 %v180
    %687 = vmatprep.subr.mxu0 %v189
    %688 = vmatpush1.msra.mxu0 %v188
    %689 = vmatprep.subr.mxu0 %v197
    %690 = vmatpush1.msra.mxu0 %v196
    %691 = vmatprep.subr.mxu0 %v205
    %692 = vmatpush1.msra.mxu0 %v204
    %693 = vmatprep.subr.mxu0 %v213
    %694 = vmatpush1.msra.mxu0 %v212
    %695 = vmatprep.subr.mxu0 %v221
    %696 = vmatpush1.msra.mxu0 %v220
    %697 = vmatprep.subr.mxu0 %v229
    %698 = vmatpush1.msra.mxu0 %v228
    %699 = vmatprep.subr.mxu0 %v237
    %700 = vmatpush1.msra.mxu0 %v236
    %701 = vmatprep.subr.mxu0 %v245
    %702 = vmatpush1.msra.mxu0 %v244
    %703 = vmatprep.subr.mxu0 %v253
    %704 = vmatpush1.msra.mxu0 %v252
    %705 = vmatprep.subr.mxu0 %v261
    %706 = vmatpush1.msra.mxu0 %v260
    %707 = vmatprep.subr.mxu0 %v269
    %708 = vmatpush1.msra.mxu0 %v268
    %709 = vmatprep.subr.mxu0 %v277
    %710 = vmatpush1.msra.mxu0 %v276
    %711 = vmatprep.subr.mxu0 %v285
    %712 = vmatpush1.msra.mxu0 %v284
    %713 = vmatprep.subr.mxu0 %v293
    %714 = vmatpush1.msra.mxu0 %v292
    %715 = vmatprep.subr.mxu0 %v301
    %716 = vmatpush1.msra.mxu0 %v300
    %717 = vmatprep.subr.mxu0 %v309
    %718 = vmatpush1.msra.mxu0 %v308
    %719 = vmatprep.subr.mxu0 %v317
    %720 = vmatpush1.msra.mxu0 %v316
    %721 = vmatprep.subr.mxu0 %v325
    %722 = vmatpush1.msra.mxu0 %v324
    %723 = vmatprep.subr.mxu0 %v333
    %724 = vmatpush1.msra.mxu0 %v332
    %725 = vmatprep.subr.mxu0 %v341
    %726 = vmatpush1.msra.mxu0 %v340
    %727 = vmatprep.subr.mxu0 %v349
    %728 = vmatpush1.msra.mxu0 %v348
    %729 = vmatprep.subr.mxu0 %v357
    %730 = vmatpush1.msra.mxu0 %v356
    %731 = vmatprep.subr.mxu0 %v365
    %732 = vmatpush1.msra.mxu0 %v364
    %733 = vmatprep.subr.mxu0 %v373
    %734 = vmatpush1.msra.mxu0 %v372
    %735 = vmatprep.subr.mxu0 %v381
    %736 = vmatpush1.msra.mxu0 %v380
    %737 = vmatprep.subr.mxu0 %v389
    %738 = vmatpush1.msra.mxu0 %v388
    %739 = vmatprep.subr.mxu0 %v397
    %740 = vmatpush1.msra.mxu0 %v396
    %741 = vmatprep.subr.mxu0 %v405
    %742 = vmatpush1.msra.mxu0 %v404
    %743 = vmatprep.subr.mxu0 %v413
    %744 = vmatpush1.msra.mxu0 %v412
    %745 = vmatprep.subr.mxu0 %v421
    %746 = vmatpush1.msra.mxu0 %v420
    %747 = vmatprep.subr.mxu0 %v429
    %748 = vmatpush1.msra.mxu0 %v428
    %749 = vmatprep.mubr.f32.mxu0 %v173
    %750 = vmatmul.mubr.f32.gmra.mrb[0].mxu0 %v172
    %v751 = vpop.f32.mrb[0].mxu0
    %v752 = vadd.f32 %v459, %v751
    %v753 = vpop.f32.mrb[0].mxu0
    %v754 = vadd.f32 %v463, %v753
    %755 = vdwg.mxu0
    %v756 = vtanh.pop %v539
    %v757 = vtanh.pop %v541
    %v758 = vtanh.pop %v610
    %v759 = vtanh.pop %v612
    %v760 = vtanh.pop %v681
    %v761 = vtanh.pop %v683
    %v762 = vtanh.pop %v752
    %v763 = vtanh.pop %v754
    %v764 = vld [vmem:[#allocation7] sm:$0xff]
    %v765 = vld [vmem:[#allocation7 + $0x8] sm:$0xff]
    %v766 = vld [vmem:[#allocation7 + $0x10] sm:$0xff]
    %v767 = vld [vmem:[#allocation7 + $0x18] sm:$0xff]
    %v768 = vld [vmem:[#allocation7 + $0x20] sm:$0xff]
    %v769 = vld [vmem:[#allocation7 + $0x28] sm:$0xff]
    %v770 = vld [vmem:[#allocation7 + $0x30] sm:$0xff]
    %v771 = vld [vmem:[#allocation7 + $0x38] sm:$0xff]
    %v772 = vld [vmem:[#allocation7 + $0x40] sm:$0xff]
    %v773 = vld [vmem:[#allocation7 + $0x48] sm:$0xff]
    %v774 = vld [vmem:[#allocation7 + $0x50] sm:$0xff]
    %v775 = vld [vmem:[#allocation7 + $0x58] sm:$0xff]
    %v776 = vld [vmem:[#allocation7 + $0x60] sm:$0xff]
    %v777 = vld [vmem:[#allocation7 + $0x68] sm:$0xff]
    %v778 = vld [vmem:[#allocation7 + $0x70] sm:$0xff]
    %v779 = vld [vmem:[#allocation7 + $0x78] sm:$0xff]
    %v780 = vld [vmem:[#allocation7 + $0x80] sm:$0xff]
    %v781 = vld [vmem:[#allocation7 + $0x88] sm:$0xff]
    %v782 = vld [vmem:[#allocation7 + $0x90] sm:$0xff]
    %v783 = vld [vmem:[#allocation7 + $0x98] sm:$0xff]
    %v784 = vld [vmem:[#allocation7 + $0xa0] sm:$0xff]
    %v785 = vld [vmem:[#allocation7 + $0xa8] sm:$0xff]
    %v786 = vld [vmem:[#allocation7 + $0xb0] sm:$0xff]
    %v787 = vld [vmem:[#allocation7 + $0xb8] sm:$0xff]
    %v788 = vld [vmem:[#allocation7 + $0xc0] sm:$0xff]
    %v789 = vld [vmem:[#allocation7 + $0xc8] sm:$0xff]
    %v790 = vld [vmem:[#allocation7 + $0xd0] sm:$0xff]
    %v791 = vld [vmem:[#allocation7 + $0xd8] sm:$0xff]
    %v792 = vld [vmem:[#allocation7 + $0xe0] sm:$0xff]
    %v793 = vld [vmem:[#allocation7 + $0xe8] sm:$0xff]
    %v794 = vld [vmem:[#allocation7 + $0xf0] sm:$0xff]
    %v795 = vld [vmem:[#allocation7 + $0xf8] sm:$0xff]
    %v796 = vld [vmem:[#allocation7 + $0x100] sm:$0xff]
    %v797 = vld [vmem:[#allocation7 + $0x108] sm:$0xff]
    %v798 = vld [vmem:[#allocation7 + $0x110] sm:$0xff]
    %v799 = vld [vmem:[#allocation7 + $0x118] sm:$0xff]
    %v800 = vld [vmem:[#allocation7 + $0x120] sm:$0xff]
    %v801 = vld [vmem:[#allocation7 + $0x128] sm:$0xff]
    %v802 = vld [vmem:[#allocation7 + $0x130] sm:$0xff]
    %v803 = vld [vmem:[#allocation7 + $0x138] sm:$0xff]
    %v804 = vld [vmem:[#allocation7 + $0x140] sm:$0xff]
    %v805 = vld [vmem:[#allocation7 + $0x148] sm:$0xff]
    %v806 = vld [vmem:[#allocation7 + $0x150] sm:$0xff]
    %v807 = vld [vmem:[#allocation7 + $0x158] sm:$0xff]
    %v808 = vld [vmem:[#allocation7 + $0x160] sm:$0xff]
    %v809 = vld [vmem:[#allocation7 + $0x168] sm:$0xff]
    %v810 = vld [vmem:[#allocation7 + $0x170] sm:$0xff]
    %v811 = vld [vmem:[#allocation7 + $0x178] sm:$0xff]
    %v812 = vld [vmem:[#allocation7 + $0x180] sm:$0xff]
    %v813 = vld [vmem:[#allocation7 + $0x188] sm:$0xff]
    %v814 = vld [vmem:[#allocation7 + $0x190] sm:$0xff]
    %v815 = vld [vmem:[#allocation7 + $0x198] sm:$0xff]
    %v816 = vld [vmem:[#allocation7 + $0x1a0] sm:$0xff]
    %v817 = vld [vmem:[#allocation7 + $0x1a8] sm:$0xff]
    %v818 = vld [vmem:[#allocation7 + $0x1b0] sm:$0xff]
    %v819 = vld [vmem:[#allocation7 + $0x1b8] sm:$0xff]
    %v820 = vld [vmem:[#allocation7 + $0x1c0] sm:$0xff]
    %v821 = vld [vmem:[#allocation7 + $0x1c8] sm:$0xff]
    %v822 = vld [vmem:[#allocation7 + $0x1d0] sm:$0xff]
    %v823 = vld [vmem:[#allocation7 + $0x1d8] sm:$0xff]
    %v824 = vld [vmem:[#allocation7 + $0x1e0] sm:$0xff]
    %v825 = vld [vmem:[#allocation7 + $0x1e8] sm:$0xff]
    %v826 = vld [vmem:[#allocation7 + $0x1f0] sm:$0xff]
    %v827 = vld [vmem:[#allocation7 + $0x1f8] sm:$0xff]
    %v828 = vld [vmem:[#allocation7 + $0x200] sm:$0xff]
    %v829 = vld [vmem:[#allocation7 + $0x208] sm:$0xff]
    %v830 = vld [vmem:[#allocation7 + $0x210] sm:$0xff]
    %v831 = vld [vmem:[#allocation7 + $0x218] sm:$0xff]
    %v832 = vld [vmem:[#allocation7 + $0x220] sm:$0xff]
    %v833 = vld [vmem:[#allocation7 + $0x228] sm:$0xff]
    %v834 = vld [vmem:[#allocation7 + $0x230] sm:$0xff]
    %v835 = vld [vmem:[#allocation7 + $0x238] sm:$0xff]
    %v836 = vld [vmem:[#allocation7 + $0x240] sm:$0xff]
    %v837 = vld [vmem:[#allocation7 + $0x248] sm:$0xff]
    %v838 = vld [vmem:[#allocation7 + $0x250] sm:$0xff]
    %v839 = vld [vmem:[#allocation7 + $0x258] sm:$0xff]
    %v840 = vld [vmem:[#allocation7 + $0x260] sm:$0xff]
    %v841 = vld [vmem:[#allocation7 + $0x268] sm:$0xff]
    %v842 = vld [vmem:[#allocation7 + $0x270] sm:$0xff]
    %v843 = vld [vmem:[#allocation7 + $0x278] sm:$0xff]
    %v844 = vld [vmem:[#allocation7 + $0x280] sm:$0xff]
    %v845 = vld [vmem:[#allocation7 + $0x288] sm:$0xff]
    %v846 = vld [vmem:[#allocation7 + $0x290] sm:$0xff]
    %v847 = vld [vmem:[#allocation7 + $0x298] sm:$0xff]
    %v848 = vld [vmem:[#allocation7 + $0x2a0] sm:$0xff]
    %v849 = vld [vmem:[#allocation7 + $0x2a8] sm:$0xff]
    %v850 = vld [vmem:[#allocation7 + $0x2b0] sm:$0xff]
    %v851 = vld [vmem:[#allocation7 + $0x2b8] sm:$0xff]
    %v852 = vld [vmem:[#allocation7 + $0x2c0] sm:$0xff]
    %v853 = vld [vmem:[#allocation7 + $0x2c8] sm:$0xff]
    %v854 = vld [vmem:[#allocation7 + $0x2d0] sm:$0xff]
    %v855 = vld [vmem:[#allocation7 + $0x2d8] sm:$0xff]
    %v856 = vld [vmem:[#allocation7 + $0x2e0] sm:$0xff]
    %v857 = vld [vmem:[#allocation7 + $0x2e8] sm:$0xff]
    %v858 = vld [vmem:[#allocation7 + $0x2f0] sm:$0xff]
    %v859 = vld [vmem:[#allocation7 + $0x2f8] sm:$0xff]
    %v860 = vld [vmem:[#allocation7 + $0x300] sm:$0xff]
    %v861 = vld [vmem:[#allocation7 + $0x308] sm:$0xff]
    %v862 = vld [vmem:[#allocation7 + $0x310] sm:$0xff]
    %v863 = vld [vmem:[#allocation7 + $0x318] sm:$0xff]
    %v864 = vld [vmem:[#allocation7 + $0x320] sm:$0xff]
    %v865 = vld [vmem:[#allocation7 + $0x328] sm:$0xff]
    %v866 = vld [vmem:[#allocation7 + $0x330] sm:$0xff]
    %v867 = vld [vmem:[#allocation7 + $0x338] sm:$0xff]
    %v868 = vld [vmem:[#allocation7 + $0x340] sm:$0xff]
    %v869 = vld [vmem:[#allocation7 + $0x348] sm:$0xff]
    %v870 = vld [vmem:[#allocation7 + $0x350] sm:$0xff]
    %v871 = vld [vmem:[#allocation7 + $0x358] sm:$0xff]
    %v872 = vld [vmem:[#allocation7 + $0x360] sm:$0xff]
    %v873 = vld [vmem:[#allocation7 + $0x368] sm:$0xff]
    %v874 = vld [vmem:[#allocation7 + $0x370] sm:$0xff]
    %v875 = vld [vmem:[#allocation7 + $0x378] sm:$0xff]
    %v876 = vld [vmem:[#allocation7 + $0x380] sm:$0xff]
    %v877 = vld [vmem:[#allocation7 + $0x388] sm:$0xff]
    %v878 = vld [vmem:[#allocation7 + $0x390] sm:$0xff]
    %v879 = vld [vmem:[#allocation7 + $0x398] sm:$0xff]
    %v880 = vld [vmem:[#allocation7 + $0x3a0] sm:$0xff]
    %v881 = vld [vmem:[#allocation7 + $0x3a8] sm:$0xff]
    %v882 = vld [vmem:[#allocation7 + $0x3b0] sm:$0xff]
    %v883 = vld [vmem:[#allocation7 + $0x3b8] sm:$0xff]
    %v884 = vld [vmem:[#allocation7 + $0x3c0] sm:$0xff]
    %v885 = vld [vmem:[#allocation7 + $0x3c8] sm:$0xff]
    %v886 = vld [vmem:[#allocation7 + $0x3d0] sm:$0xff]
    %v887 = vld [vmem:[#allocation7 + $0x3d8] sm:$0xff]
    %v888 = vld [vmem:[#allocation7 + $0x3e0] sm:$0xff]
    %v889 = vld [vmem:[#allocation7 + $0x3e8] sm:$0xff]
    %v890 = vld [vmem:[#allocation7 + $0x3f0] sm:$0xff]
    %v891 = vld [vmem:[#allocation7 + $0x3f8] sm:$0xff]
    %v892 = vld [vmem:[%s6] sm:$0x1]
    %v894 = vlaneseq
    %v895 = vshrl.u32 %v894, 7
    %v896 = vsub.s32 0, %v895
    %v897 = vrot.slane %v892, %v896
    %899 = vmatprep.subr.mxu0 0.0
    %900 = vmatpush1.msra.mxu0 %v764
    %901 = vmatprep.subr.mxu0 0.0
    %902 = vmatpush1.msra.mxu0 %v765
    %903 = vmatprep.subr.mxu0 0.0
    %904 = vmatpush1.msra.mxu0 %v766
    %905 = vmatprep.subr.mxu0 0.0
    %906 = vmatpush1.msra.mxu0 %v767
    %907 = vmatprep.subr.mxu0 0.0
    %908 = vmatpush1.msra.mxu0 %v768
    %909 = vmatprep.subr.mxu0 0.0
    %910 = vmatpush1.msra.mxu0 %v769
    %911 = vmatprep.subr.mxu0 0.0
    %912 = vmatpush1.msra.mxu0 %v770
    %913 = vmatprep.subr.mxu0 0.0
    %914 = vmatpush1.msra.mxu0 %v771
    %915 = vmatprep.subr.mxu0 0.0
    %916 = vmatpush1.msra.mxu0 %v772
    %917 = vmatprep.subr.mxu0 0.0
    %918 = vmatpush1.msra.mxu0 %v773
    %919 = vmatprep.subr.mxu0 0.0
    %920 = vmatpush1.msra.mxu0 %v774
    %921 = vmatprep.subr.mxu0 0.0
    %922 = vmatpush1.msra.mxu0 %v775
    %923 = vmatprep.subr.mxu0 0.0
    %924 = vmatpush1.msra.mxu0 %v776
    %925 = vmatprep.subr.mxu0 0.0
    %926 = vmatpush1.msra.mxu0 %v777
    %927 = vmatprep.subr.mxu0 0.0
    %928 = vmatpush1.msra.mxu0 %v778
    %929 = vmatprep.subr.mxu0 0.0
    %930 = vmatpush1.msra.mxu0 %v779
    %931 = vmatprep.subr.mxu0 0.0
    %932 = vmatpush1.msra.mxu0 %v780
    %933 = vmatprep.subr.mxu0 0.0
    %934 = vmatpush1.msra.mxu0 %v781
    %935 = vmatprep.subr.mxu0 0.0
    %936 = vmatpush1.msra.mxu0 %v782
    %937 = vmatprep.subr.mxu0 0.0
    %938 = vmatpush1.msra.mxu0 %v783
    %939 = vmatprep.subr.mxu0 0.0
    %940 = vmatpush1.msra.mxu0 %v784
    %941 = vmatprep.subr.mxu0 0.0
    %942 = vmatpush1.msra.mxu0 %v785
    %943 = vmatprep.subr.mxu0 0.0
    %944 = vmatpush1.msra.mxu0 %v786
    %945 = vmatprep.subr.mxu0 0.0
    %946 = vmatpush1.msra.mxu0 %v787
    %947 = vmatprep.subr.mxu0 0.0
    %948 = vmatpush1.msra.mxu0 %v788
    %949 = vmatprep.subr.mxu0 0.0
    %950 = vmatpush1.msra.mxu0 %v789
    %951 = vmatprep.subr.mxu0 0.0
    %952 = vmatpush1.msra.mxu0 %v790
    %953 = vmatprep.subr.mxu0 0.0
    %954 = vmatpush1.msra.mxu0 %v791
    %955 = vmatprep.subr.mxu0 0.0
    %956 = vmatpush1.msra.mxu0 %v792
    %957 = vmatprep.subr.mxu0 0.0
    %958 = vmatpush1.msra.mxu0 %v793
    %959 = vmatprep.subr.mxu0 0.0
    %960 = vmatpush1.msra.mxu0 %v794
    %961 = vmatprep.subr.mxu0 0.0
    %962 = vmatpush1.msra.mxu0 %v795
    %963 = vmatprep.mubr.f32.mxu0 %v757
    %964 = vmatmul.mubr.f32.gmra.mrb[0].mxu0 %v756
    %v965 = vpop.f32.mrb[0].mxu0
    %v966 = vadd.f32 %v897, %v965
    %v967 = vpop.f32.mrb[0].mxu0
    %968 = vdwg.mxu0
    %969 = vmatprep.subr.mxu0 0.0
    %970 = vmatpush1.msra.mxu0 %v796
    %971 = vmatprep.subr.mxu0 0.0
    %972 = vmatpush1.msra.mxu0 %v797
    %973 = vmatprep.subr.mxu0 0.0
    %974 = vmatpush1.msra.mxu0 %v798
    %975 = vmatprep.subr.mxu0 0.0
    %976 = vmatpush1.msra.mxu0 %v799
    %977 = vmatprep.subr.mxu0 0.0
    %978 = vmatpush1.msra.mxu0 %v800
    %979 = vmatprep.subr.mxu0 0.0
    %980 = vmatpush1.msra.mxu0 %v801
    %981 = vmatprep.subr.mxu0 0.0
    %982 = vmatpush1.msra.mxu0 %v802
    %983 = vmatprep.subr.mxu0 0.0
    %984 = vmatpush1.msra.mxu0 %v803
    %985 = vmatprep.subr.mxu0 0.0
    %986 = vmatpush1.msra.mxu0 %v804
    %987 = vmatprep.subr.mxu0 0.0
    %988 = vmatpush1.msra.mxu0 %v805
    %989 = vmatprep.subr.mxu0 0.0
    %990 = vmatpush1.msra.mxu0 %v806
    %991 = vmatprep.subr.mxu0 0.0
    %992 = vmatpush1.msra.mxu0 %v807
    %993 = vmatprep.subr.mxu0 0.0
    %994 = vmatpush1.msra.mxu0 %v808
    %995 = vmatprep.subr.mxu0 0.0
    %996 = vmatpush1.msra.mxu0 %v809
    %997 = vmatprep.subr.mxu0 0.0
    %998 = vmatpush1.msra.mxu0 %v810
    %999 = vmatprep.subr.mxu0 0.0
    %1000 = vmatpush1.msra.mxu0 %v811
    %1001 = vmatprep.subr.mxu0 0.0
    %1002 = vmatpush1.msra.mxu0 %v812
    %1003 = vmatprep.subr.mxu0 0.0
    %1004 = vmatpush1.msra.mxu0 %v813
    %1005 = vmatprep.subr.mxu0 0.0
    %1006 = vmatpush1.msra.mxu0 %v814
    %1007 = vmatprep.subr.mxu0 0.0
    %1008 = vmatpush1.msra.mxu0 %v815
    %1009 = vmatprep.subr.mxu0 0.0
    %1010 = vmatpush1.msra.mxu0 %v816
    %1011 = vmatprep.subr.mxu0 0.0
    %1012 = vmatpush1.msra.mxu0 %v817
    %1013 = vmatprep.subr.mxu0 0.0
    %1014 = vmatpush1.msra.mxu0 %v818
    %1015 = vmatprep.subr.mxu0 0.0
    %1016 = vmatpush1.msra.mxu0 %v819
    %1017 = vmatprep.subr.mxu0 0.0
    %1018 = vmatpush1.msra.mxu0 %v820
    %1019 = vmatprep.subr.mxu0 0.0
    %1020 = vmatpush1.msra.mxu0 %v821
    %1021 = vmatprep.subr.mxu0 0.0
    %1022 = vmatpush1.msra.mxu0 %v822
    %1023 = vmatprep.subr.mxu0 0.0
    %1024 = vmatpush1.msra.mxu0 %v823
    %1025 = vmatprep.subr.mxu0 0.0
    %1026 = vmatpush1.msra.mxu0 %v824
    %1027 = vmatprep.subr.mxu0 0.0
    %1028 = vmatpush1.msra.mxu0 %v825
    %1029 = vmatprep.subr.mxu0 0.0
    %1030 = vmatpush1.msra.mxu0 %v826
    %1031 = vmatprep.subr.mxu0 0.0
    %1032 = vmatpush1.msra.mxu0 %v827
    %1033 = vmatprep.mubr.f32.mxu0 %v759
    %1034 = vmatmul.mubr.f32.gmra.mrb[0].mxu0 %v758
    %v1035 = vpop.f32.mrb[0].mxu0
    %v1036 = vadd.f32 %v966, %v1035
    %v1037 = vpop.f32.mrb[0].mxu0
    %1038 = vdwg.mxu0
    %1039 = vmatprep.subr.mxu0 0.0
    %1040 = vmatpush1.msra.mxu0 %v828
    %1041 = vmatprep.subr.mxu0 0.0
    %1042 = vmatpush1.msra.mxu0 %v829
    %1043 = vmatprep.subr.mxu0 0.0
    %1044 = vmatpush1.msra.mxu0 %v830
    %1045 = vmatprep.subr.mxu0 0.0
    %1046 = vmatpush1.msra.mxu0 %v831
    %1047 = vmatprep.subr.mxu0 0.0
    %1048 = vmatpush1.msra.mxu0 %v832
    %1049 = vmatprep.subr.mxu0 0.0
    %1050 = vmatpush1.msra.mxu0 %v833
    %1051 = vmatprep.subr.mxu0 0.0
    %1052 = vmatpush1.msra.mxu0 %v834
    %1053 = vmatprep.subr.mxu0 0.0
    %1054 = vmatpush1.msra.mxu0 %v835
    %1055 = vmatprep.subr.mxu0 0.0
    %1056 = vmatpush1.msra.mxu0 %v836
    %1057 = vmatprep.subr.mxu0 0.0
    %1058 = vmatpush1.msra.mxu0 %v837
    %1059 = vmatprep.subr.mxu0 0.0
    %1060 = vmatpush1.msra.mxu0 %v838
    %1061 = vmatprep.subr.mxu0 0.0
    %1062 = vmatpush1.msra.mxu0 %v839
    %1063 = vmatprep.subr.mxu0 0.0
    %1064 = vmatpush1.msra.mxu0 %v840
    %1065 = vmatprep.subr.mxu0 0.0
    %1066 = vmatpush1.msra.mxu0 %v841
    %1067 = vmatprep.subr.mxu0 0.0
    %1068 = vmatpush1.msra.mxu0 %v842
    %1069 = vmatprep.subr.mxu0 0.0
    %1070 = vmatpush1.msra.mxu0 %v843
    %1071 = vmatprep.subr.mxu0 0.0
    %1072 = vmatpush1.msra.mxu0 %v844
    %1073 = vmatprep.subr.mxu0 0.0
    %1074 = vmatpush1.msra.mxu0 %v845
    %1075 = vmatprep.subr.mxu0 0.0
    %1076 = vmatpush1.msra.mxu0 %v846
    %1077 = vmatprep.subr.mxu0 0.0
    %1078 = vmatpush1.msra.mxu0 %v847
    %1079 = vmatprep.subr.mxu0 0.0
    %1080 = vmatpush1.msra.mxu0 %v848
    %1081 = vmatprep.subr.mxu0 0.0
    %1082 = vmatpush1.msra.mxu0 %v849
    %1083 = vmatprep.subr.mxu0 0.0
    %1084 = vmatpush1.msra.mxu0 %v850
    %1085 = vmatprep.subr.mxu0 0.0
    %1086 = vmatpush1.msra.mxu0 %v851
    %1087 = vmatprep.subr.mxu0 0.0
    %1088 = vmatpush1.msra.mxu0 %v852
    %1089 = vmatprep.subr.mxu0 0.0
    %1090 = vmatpush1.msra.mxu0 %v853
    %1091 = vmatprep.subr.mxu0 0.0
    %1092 = vmatpush1.msra.mxu0 %v854
    %1093 = vmatprep.subr.mxu0 0.0
    %1094 = vmatpush1.msra.mxu0 %v855
    %1095 = vmatprep.subr.mxu0 0.0
    %1096 = vmatpush1.msra.mxu0 %v856
    %1097 = vmatprep.subr.mxu0 0.0
    %1098 = vmatpush1.msra.mxu0 %v857
    %1099 = vmatprep.subr.mxu0 0.0
    %1100 = vmatpush1.msra.mxu0 %v858
    %1101 = vmatprep.subr.mxu0 0.0
    %1102 = vmatpush1.msra.mxu0 %v859
    %1103 = vmatprep.mubr.f32.mxu0 %v761
    %1104 = vmatmul.mubr.f32.gmra.mrb[0].mxu0 %v760
    %v1105 = vpop.f32.mrb[0].mxu0
    %v1106 = vadd.f32 %v1036, %v1105
    %v1107 = vpop.f32.mrb[0].mxu0
    %1108 = vdwg.mxu0
    %1109 = vmatprep.subr.mxu0 0.0
    %1110 = vmatpush1.msra.mxu0 %v860
    %1111 = vmatprep.subr.mxu0 0.0
    %1112 = vmatpush1.msra.mxu0 %v861
    %1113 = vmatprep.subr.mxu0 0.0
    %1114 = vmatpush1.msra.mxu0 %v862
    %1115 = vmatprep.subr.mxu0 0.0
    %1116 = vmatpush1.msra.mxu0 %v863
    %1117 = vmatprep.subr.mxu0 0.0
    %1118 = vmatpush1.msra.mxu0 %v864
    %1119 = vmatprep.subr.mxu0 0.0
    %1120 = vmatpush1.msra.mxu0 %v865
    %1121 = vmatprep.subr.mxu0 0.0
    %1122 = vmatpush1.msra.mxu0 %v866
    %1123 = vmatprep.subr.mxu0 0.0
    %1124 = vmatpush1.msra.mxu0 %v867
    %1125 = vmatprep.subr.mxu0 0.0
    %1126 = vmatpush1.msra.mxu0 %v868
    %1127 = vmatprep.subr.mxu0 0.0
    %1128 = vmatpush1.msra.mxu0 %v869
    %1129 = vmatprep.subr.mxu0 0.0
    %1130 = vmatpush1.msra.mxu0 %v870
    %1131 = vmatprep.subr.mxu0 0.0
    %1132 = vmatpush1.msra.mxu0 %v871
    %1133 = vmatprep.subr.mxu0 0.0
    %1134 = vmatpush1.msra.mxu0 %v872
    %1135 = vmatprep.subr.mxu0 0.0
    %1136 = vmatpush1.msra.mxu0 %v873
    %1137 = vmatprep.subr.mxu0 0.0
    %1138 = vmatpush1.msra.mxu0 %v874
    %1139 = vmatprep.subr.mxu0 0.0
    %1140 = vmatpush1.msra.mxu0 %v875
    %1141 = vmatprep.subr.mxu0 0.0
    %1142 = vmatpush1.msra.mxu0 %v876
    %1143 = vmatprep.subr.mxu0 0.0
    %1144 = vmatpush1.msra.mxu0 %v877
    %1145 = vmatprep.subr.mxu0 0.0
    %1146 = vmatpush1.msra.mxu0 %v878
    %1147 = vmatprep.subr.mxu0 0.0
    %1148 = vmatpush1.msra.mxu0 %v879
    %1149 = vmatprep.subr.mxu0 0.0
    %1150 = vmatpush1.msra.mxu0 %v880
    %1151 = vmatprep.subr.mxu0 0.0
    %1152 = vmatpush1.msra.mxu0 %v881
    %1153 = vmatprep.subr.mxu0 0.0
    %1154 = vmatpush1.msra.mxu0 %v882
    %1155 = vmatprep.subr.mxu0 0.0
    %1156 = vmatpush1.msra.mxu0 %v883
    %1157 = vmatprep.subr.mxu0 0.0
    %1158 = vmatpush1.msra.mxu0 %v884
    %1159 = vmatprep.subr.mxu0 0.0
    %1160 = vmatpush1.msra.mxu0 %v885
    %1161 = vmatprep.subr.mxu0 0.0
    %1162 = vmatpush1.msra.mxu0 %v886
    %1163 = vmatprep.subr.mxu0 0.0
    %1164 = vmatpush1.msra.mxu0 %v887
    %1165 = vmatprep.subr.mxu0 0.0
    %1166 = vmatpush1.msra.mxu0 %v888
    %1167 = vmatprep.subr.mxu0 0.0
    %1168 = vmatpush1.msra.mxu0 %v889
    %1169 = vmatprep.subr.mxu0 0.0
    %1170 = vmatpush1.msra.mxu0 %v890
    %1171 = vmatprep.subr.mxu0 0.0
    %1172 = vmatpush1.msra.mxu0 %v891
    %1173 = vmatprep.mubr.f32.mxu0 %v763
    %1174 = vmatmul.mubr.f32.gmra.mrb[0].mxu0 %v762
    %v1175 = vpop.f32.mrb[0].mxu0
    %v1176 = vadd.f32 %v1106, %v1175
    %v1177 = vpop.f32.mrb[0].mxu0
    %1178 = vdwg.mxu0
    %1179 = vst [vmem:[#allocation8] sm:$0x3] %v1176
    // Predicated region
    $region42: #{cnn2ch_forward.1} parent=1 // pred_check
      _
    $region43: #{cnn2ch_forward.1} parent=1 // pred_check_branch
      %1181 = sbr.rel (0) target = $region45
    $region44: #{cnn2ch_forward.1} parent=1 // pred_region
      %s1183 = ssub.s32 32, 32
      %1184 = vsyncadd [#allocation4], %s1183
      %s1186 = sshll.u32 [#allocation8], 4
      %s1187 = int_to_ptr.vmem [resolvable:$true] %s1186
      %1189 = dma.vmem_to_hbm [thread:$0]  %s1187, 32, %s7, [#allocation4]
    $region45: #{cnn2ch_forward.1} parent=1 // pred_fallthru
      _
    // Predicated region
    $region46: #{cnn2ch_forward.1} parent=1 // pred_check
      _
    $region47: #{cnn2ch_forward.1} parent=1 // pred_check_branch
      %1191 = sbr.rel (0) target = $region49
    $region48: #{cnn2ch_forward.1} parent=1 // pred_region
      %1192 = dma.done [#allocation4], 32
    $region49: #{cnn2ch_forward.1} parent=1 // pred_fallthru
      _
    %1193 = vsyncpa [#allocation3], 1
    %1194 = vsyncpa [#allocation6], 1
    %1195 = vsyncpa [#allocation4], 1

</llo_original>
